<compile_context>
chip_gen: v7x
topology: tpu7x:2x2x1
jax: 0.10.0
libtpu: 0.0.40
codegen_flags: <defaults>
</compile_context>

<pallas_src>
import functools

import jax
import jax.numpy as jnp
from jax import lax
from jax.experimental import pallas as pl
from jax.experimental.pallas import tpu as pltpu


def _round_up(x, m):
    return ((x + m - 1) // m) * m


def _obs_head_kernel(latents):
    L = latents

    def kernel(x_ref, w_ref, b_ref, y_ref):
        # In-VMEM cast of the activations to the MXU dtype.  Doing this here
        # (instead of a wrapper-side .astype) avoids a standalone XLA convert
        # pass over the largest tensor in HBM.
        x = x_ref[...].astype(w_ref.dtype)               # (TM, H)
        w = w_ref[...]                                    # (H, O) compute dtype
        b = b_ref[...]                                    # (1, O) f32

        # MXU matmul with f32 accumulation; bias add on the VPU in f32.
        y = jnp.dot(x, w, preferred_element_type=jnp.float32) + b   # (TM, O)

        # exp only on the log-sigma columns [L, 2L).  Pure lane-local
        # iota + select: EUP/VPU filler under an HBM-bound kernel, no
        # cross-lane layout work.  (Select, so a stray inf never propagates.)
        col = lax.broadcasted_iota(jnp.int32, y.shape, 1)
        is_sigma = (col >= L) & (col < 2 * L)
        y_ref[...] = jnp.where(is_sigma, jnp.exp(y), y)

    return kernel


def prepare_params(weight, bias, compute_dtype=jnp.bfloat16):
    """Hoist the per-call weight cast / bias reshape out of the hot loop.

    weight : (hiddens, 2*latents+2)  (torch weight (O, H) transposed)
    bias   : (2*latents+2,)
    """
    w_c = jnp.asarray(weight, compute_dtype)
    b2 = jnp.asarray(bias, jnp.float32).reshape(1, -1)
    return w_c, b2


def _choose_tm(M, H, O, tm_req):
    """Pick a row tile: multiple of 16 sublanes, VMEM-safe, >=2 grid steps."""
    TM = max(16, _round_up(min(tm_req, M), 16))

    def vmem_bytes(tm):
        # Conservative: f32 x tile + f32 y tile both double-buffered,
        # resident weight counted at 4B/elem for headroom.
        return (2 * tm * H * 4          # x tile (f32), double-buffered
                + H * O * 4             # resident weight
                + O * 4                 # bias
                + 2 * tm * O * 4)       # y tile (f32), double-buffered

    budget = 48 * 1024 * 1024           # safely inside v7x's 64 MiB physical VMEM
    while TM > 16 and vmem_bytes(TM) > budget:
        TM = max(16, _round_up(TM // 2, 16))

    # v7x has 2 TensorCores per chip: make sure the "parallel" M axis has at
    # least 2 grid steps when there is enough work to split.
    if pl.cdiv(M, TM) == 1 and M > 16:
        TM = max(16, _round_up(pl.cdiv(M, 2), 16))

    return TM, vmem_bytes(TM)


@functools.partial(jax.jit, static_argnames=("latents", "tm"))
def vaernn_no_gmm_head(h, weight_c, bias2d, latents, *, tm=2048):
    """Apply the obs_linear head to hidden states.

    h        : (batch, seq, hiddens)   f32 (or bf16) activations
    weight_c : (hiddens, 2*latents+2)  compute-dtype weight (see prepare_params)
    bias2d   : (1, 2*latents+2)        f32 bias
    Returns (mus, sigmas, rewards, dones) with shapes
            (B, S, L), (B, S, L), (B, S, 1), (B, S, 1).
    """
    B, S, H = h.shape
    O = 2 * latents + 2
    assert weight_c.shape == (H, O)
    assert bias2d.shape == (1, O)
    M = B * S

    # No pad, no cast: the kernel reads the raw activations and the grid's
    # partial last block is masked by Pallas.
    x = h.reshape(M, H)

    TM, vmem_needed = _choose_tm(M, H, O, tm)
    grid = (pl.cdiv(M, TM),)

    itemsize_x = jnp.dtype(h.dtype).itemsize
    itemsize_w = jnp.dtype(weight_c.dtype).itemsize
    cost = pl.CostEstimate(
        flops=2 * M * H * O,
        transcendentals=M * O,
        bytes_accessed=(M * H * itemsize_x      # x
                        + H * O * itemsize_w    # weight
                        + O * 4                 # bias
                        + M * O * 4))           # y (narrow f32 slab)

    vmem_limit = None
    if vmem_needed > 30 * 1024 * 1024:
        vmem_limit = min(int(vmem_needed * 5 // 4) + (4 << 20), 64 << 20)

    y = pl.pallas_call(
        _obs_head_kernel(latents),
        out_shape=jax.ShapeDtypeStruct((M, O), jnp.float32),
        grid_spec=pltpu.PrefetchScalarGridSpec(
            num_scalar_prefetch=0,
            grid=grid,
            in_specs=[
                pl.BlockSpec((TM, H), lambda i: (i, 0)),   # x: streamed over M
                pl.BlockSpec((H, O), lambda i: (0, 0)),    # weight: VMEM-resident
                pl.BlockSpec((1, O), lambda i: (0, 0)),    # bias: VMEM-resident
            ],
            out_specs=pl.BlockSpec((TM, O), lambda i: (i, 0)),
        ),
        compiler_params=pltpu.CompilerParams(
            dimension_semantics=("parallel",),   # shard M across TCs on v7x
            vmem_limit_bytes=vmem_limit),
        cost_estimate=cost,
    )(x, weight_c, bias2d)

    # Wrapper-side split: pure layout plumbing on the (already narrow) slab.
    mus = y[:, :latents].reshape(B, S, latents)
    sigmas = y[:, latents:2 * latents].reshape(B, S, latents)
    rs = y[:, 2 * latents:2 * latents + 1].reshape(B, S, 1)
    ds = y[:, 2 * latents + 1:2 * latents + 2].reshape(B, S, 1)
    return mus, sigmas, rs, ds


def init_params(key, latents, hiddens):
    """Deterministic init matching nn.Linear(hiddens, 2*latents+2) shapes."""
    O = 2 * latents + 2
    kw, kb = jax.random.split(key)
    bound = 1.0 / jnp.sqrt(jnp.float32(hiddens))
    # stored as (H, O) == torch weight (O, H) transposed
    weight = jax.random.uniform(kw, (hiddens, O), jnp.float32, -bound, bound)
    bias = jax.random.uniform(kb, (O,), jnp.float32, -bound, bound)
    return weight, bias


if __name__ == "__main__":
    # Small shapes consistent with the module (gaussians unused in the no-GMM head).
    latents, actions, hiddens, gaussians = 16, 4, 32, 5
    batch, seq = 2, 8

    key = jax.random.PRNGKey(0)
    kh, kp = jax.random.split(key)
    h = jax.random.normal(kh, (batch, seq, hiddens), jnp.float32)
    weight, bias = init_params(kp, latents, hiddens)

    # Hoisted (once-per-parameter-update) cast/reshape.
    w_c, b2 = prepare_params(weight, bias)

    mus, sigmas, rs, ds = vaernn_no_gmm_head(h, w_c, b2, latents)
    jax.block_until_ready((mus, sigmas, rs, ds))

    # Reference in plain JAX with the same bf16-rounded operands
    # (MXU path uses bf16 operands + f32 accumulation).
    x_ref = h.reshape(-1, hiddens).astype(jnp.bfloat16).astype(jnp.float32)
    w_ref = weight.astype(jnp.bfloat16).astype(jnp.float32)
    y_ref = x_ref @ w_ref + bias
    mu_ref = y_ref[:, :latents].reshape(batch, seq, latents)
    sg_ref = jnp.exp(y_ref[:, latents:2 * latents]).reshape(batch, seq, latents)
    r_ref = y_ref[:, 2 * latents:2 * latents + 1].reshape(batch, seq, 1)
    d_ref = y_ref[:, 2 * latents + 1:].reshape(batch, seq, 1)

    assert jnp.allclose(mus, mu_ref, rtol=1e-2, atol=1e-3)
    assert jnp.allclose(sigmas, sg_ref, rtol=1e-2, atol=1e-3)
    assert jnp.allclose(rs, r_ref, rtol=1e-2, atol=1e-3)
    assert jnp.allclose(ds, d_ref, rtol=1e-2, atol=1e-3)

    # TODO(synk): forward() in the PyTorch base class is abstract (pass); the
    # RNN recurrence lives in subclasses and is not part of this head kernel.
    print("KERNEL_OK")
</pallas_src>

<mosaic_0001>
module attributes {stable_mosaic.version = 11 : i64} {
  func.func @kernel(%arg0: i32, %arg1: memref<16x32xf32, #tpu.memory_space<vmem>>, %arg2: memref<32x34xbf16, #tpu.memory_space<vmem>>, %arg3: memref<1x34xf32, #tpu.memory_space<vmem>>, %arg4: memref<16x34xf32, #tpu.memory_space<vmem>>) attributes {dimension_semantics = [#tpu.dimension_semantics<parallel>], iteration_bounds = array<i64: 1>, scalar_prefetch = 0 : i64, scratch_operands = 0 : i64, tpu.core_type = #tpu.core_type<tc>, window_params = [{transform_indices = @transform_0, window_bounds = array<i64: 16, 32>}, {pipeline_mode = #tpu.pipeline_mode<synchronous>, transform_indices = @transform_1, window_bounds = array<i64: 32, 34>}, {pipeline_mode = #tpu.pipeline_mode<synchronous>, transform_indices = @transform_2, window_bounds = array<i64: 1, 34>}, {transform_indices = @transform_3, window_bounds = array<i64: 16, 34>}]} {
    %c0 = arith.constant 0 : index
    %c0_0 = arith.constant 0 : index
    %0 = vector.load %arg1[%c0, %c0_0] : memref<16x32xf32, #tpu.memory_space<vmem>>, vector<16x32xf32>
    %1 = arith.truncf %0 : vector<16x32xf32> to vector<16x32xbf16>
    %c0_1 = arith.constant 0 : index
    %c0_2 = arith.constant 0 : index
    %2 = vector.load %arg2[%c0_1, %c0_2] : memref<32x34xbf16, #tpu.memory_space<vmem>>, vector<32x34xbf16>
    %c0_3 = arith.constant 0 : index
    %c0_4 = arith.constant 0 : index
    %3 = vector.load %arg3[%c0_3, %c0_4] : memref<1x34xf32, #tpu.memory_space<vmem>>, vector<1x34xf32>
    %cst = arith.constant dense<0.000000e+00> : vector<16x34xf32>
    %4 = tpu.matmul %1, %2, %cst {dimension_numbers = #tpu.dot_dimension_numbers<[1], [0], [0], [1], [0, 0, 1, 1], [], []>} : vector<16x32xbf16>, vector<32x34xbf16>, vector<16x34xf32> -> vector<16x34xf32>
    %5 = vector.broadcast %3 : vector<1x34xf32> to vector<16x34xf32>
    %6 = arith.addf %4, %5 : vector<16x34xf32>
    %7 = tpu.iota {dimensions = array<i32: 1>} : vector<16x34xi32>
    %c16_i32 = arith.constant 16 : i32
    %8 = vector.broadcast %c16_i32 : i32 to vector<16x34xi32>
    %9 = arith.cmpi sge, %7, %8 : vector<16x34xi32>
    %c32_i32 = arith.constant 32 : i32
    %10 = vector.broadcast %c32_i32 : i32 to vector<16x34xi32>
    %11 = arith.cmpi slt, %7, %10 : vector<16x34xi32>
    %12 = arith.andi %9, %11 : vector<16x34xi1>
    %13 = math.exp %6 : vector<16x34xf32>
    %14 = arith.select %12, %13, %6 : vector<16x34xi1>, vector<16x34xf32>
    %c0_5 = arith.constant 0 : index
    %c0_6 = arith.constant 0 : index
    %15 = vector.load %arg4[%c0_5, %c0_6] : memref<16x34xf32, #tpu.memory_space<vmem>>, vector<16x34xf32>
    tpu.vector_store %arg4[%c0_5, %c0_6], %14 {strides = array<i32>} : memref<16x34xf32, #tpu.memory_space<vmem>>, vector<16x34xf32>,
    return
  }
  func.func @transform_0(%arg0: i32) -> (i32, i32) {
    %c0_i32 = arith.constant 0 : i32
    %c0_i32_0 = arith.constant 0 : i32
    return %arg0, %c0_i32 : i32, i32
  }
  func.func @transform_1(%arg0: i32) -> (i32, i32) {
    %c0_i32 = arith.constant 0 : i32
    %c0_i32_0 = arith.constant 0 : i32
    %c0_i32_1 = arith.constant 0 : i32
    return %c0_i32, %c0_i32_0 : i32, i32
  }
  func.func @transform_2(%arg0: i32) -> (i32, i32) {
    %c0_i32 = arith.constant 0 : i32
    %c0_i32_0 = arith.constant 0 : i32
    %c0_i32_1 = arith.constant 0 : i32
    return %c0_i32, %c0_i32_0 : i32, i32
  }
  func.func @transform_3(%arg0: i32) -> (i32, i32) {
    %c0_i32 = arith.constant 0 : i32
    %c0_i32_0 = arith.constant 0 : i32
    return %arg0, %c0_i32 : i32, i32
  }
}

</mosaic_0001>

<llo_original>
// kernel: vaernn_no_gmm_head.1
$region0: #{vaernn_no_gmm_head.1}
  #allocation0 [shape = 'u32[]', space=smem, size = 0x4, offset = 0x4, fixed_abs, tag = 'smem constant byte address 0x4 - core index']
  #allocation1 [shape = 'u32[144,128]{1,0:T(1,128)}', space=vmem, size = 0x12000, scoped, tag = 'internal scratch']
  %s0 = inlined_call_operand.hbm [shape: f32[16,32], index: 0, kind: input, shape index: {}]
  %s1 = inlined_call_operand.hbm [shape: bf16[32,34], index: 1, kind: input, shape index: {}]
  %s2 = inlined_call_operand.vmem [shape: f32[1,34], index: 2, kind: input, shape index: {}]
  %s3 = inlined_call_operand.vmem [shape: f32[16,34], index: 3, kind: output, shape index: {}]
  %s4 = sld [smem:[#allocation0]]
  $region30: #{vaernn_no_gmm_head.1} parent=0
    _
  %s6 = ssub.s32 1, %s4
  %s7 = scalar_select 0, %s6, %s4
  $region1: #{vaernn_no_gmm_head.1} parent=0
    #allocation2 [shape = 'u8[8192]{0}', space=vmem, size = 0x2000, scoped, tag = 'input window, operand 0, single buffered']
    #allocation3 [shape = 's32[1]{0}', space=sflag, size = 0x4, scoped, tag = 'scoped memory for vaernn_no_gmm_head.1']
    #allocation4 [shape = 'u8[8192]{0}', space=vmem, size = 0x2000, scoped, tag = 'input window, operand 1, single buffered']
    #allocation5 [shape = 's32[1]{0}', space=sflag, size = 0x4, scoped, tag = 'scoped memory for vaernn_no_gmm_head.1']
    %8 = vsyncpa [#allocation3], 0
    %9 = vsyncpa [#allocation5], 0
    // Predicated region
    $region2: #{vaernn_no_gmm_head.1} parent=1 // pred_check
      _
    $region3: #{vaernn_no_gmm_head.1} parent=1 // pred_check_branch
      %11 = sbr.rel (0) target = $region5
    $region4: #{vaernn_no_gmm_head.1} parent=1 // pred_region
      %s13 = ssub.s32 256, 256
      %14 = vsyncadd [#allocation3], %s13
      %s15 = sshll.u32 [#allocation2], 4
      %s16 = int_to_ptr.vmem [resolvable:$true] %s15
      %21 = dma.hbm_to_vmem [thread:$0]  %s0, 256, %s16, [#allocation3], 128, 128, 8
    $region5: #{vaernn_no_gmm_head.1} parent=1 // pred_fallthru
      _
    // Predicated region
    $region6: #{vaernn_no_gmm_head.1} parent=1 // pred_check
      _
    $region7: #{vaernn_no_gmm_head.1} parent=1 // pred_check_branch
      %23 = sbr.rel (0) target = $region9
    $region8: #{vaernn_no_gmm_head.1} parent=1 // pred_region
      %s25 = ssub.s32 256, 256
      %26 = vsyncadd [#allocation5], %s25
      %s27 = sshll.u32 [#allocation4], 4
      %s28 = int_to_ptr.vmem [resolvable:$true] %s27
      %33 = dma.hbm_to_vmem [thread:$0]  %s1, 256, %s28, [#allocation5], 64, 64, 4
    $region9: #{vaernn_no_gmm_head.1} parent=1 // pred_fallthru
      _
    // Predicated region
    $region10: #{vaernn_no_gmm_head.1} parent=1 // pred_check
      _
    $region11: #{vaernn_no_gmm_head.1} parent=1 // pred_check_branch
      %35 = sbr.rel (0) target = $region13
    $region12: #{vaernn_no_gmm_head.1} parent=1 // pred_region
      _
    $region13: #{vaernn_no_gmm_head.1} parent=1 // pred_fallthru
      _
    // Predicated region
    $region14: #{vaernn_no_gmm_head.1} parent=1 // pred_check
      _
    $region15: #{vaernn_no_gmm_head.1} parent=1 // pred_check_branch
      %37 = sbr.rel (0) target = $region17
    $region16: #{vaernn_no_gmm_head.1} parent=1 // pred_region
      %38 = dma.done [#allocation3], 256
    $region17: #{vaernn_no_gmm_head.1} parent=1 // pred_fallthru
      _
    // Predicated region
    $region18: #{vaernn_no_gmm_head.1} parent=1 // pred_check
      _
    $region19: #{vaernn_no_gmm_head.1} parent=1 // pred_check_branch
      %40 = sbr.rel (0) target = $region21
    $region20: #{vaernn_no_gmm_head.1} parent=1 // pred_region
      %41 = dma.done [#allocation5], 256
    $region21: #{vaernn_no_gmm_head.1} parent=1 // pred_fallthru
      _
    %v43 = vld [vmem:[#allocation2] sm:$0xff]
    %v44 = vld [vmem:[#allocation2 + $0x8] sm:$0xff]
    %v45 = vpack.c.bf16 %v44, %v43
    %v46 = vld [vmem:[#allocation4] sm:$0xf]
    %v47 = vld [vmem:[#allocation4 + $0x4] sm:$0xf]
    %v48 = vld [vmem:[#allocation4 + $0x8] sm:$0xf]
    %v49 = vld [vmem:[#allocation4 + $0xc] sm:$0xf]
    %v50 = vld [vmem:[%s2] sm:$0x1]
    %v52 = vlaneseq
    %v53 = vshrl.u32 %v52, 7
    %v54 = vsub.s32 0, %v53
    %v55 = vrot.slane %v50, %v54
    %v61 = vunpack.c.l.b16 %v46
    %v62 = vunpack.c.l.b16 %v47
    %v63 = vunpack.c.l.b16 %v48
    %v64 = vunpack.c.l.b16 %v49
    %v65 = vpack.c.b16 %v62, %v61
    %v66 = vpack.c.b16 %v64, %v63
    %vm69 = vcmask 261120
    %v71 = vsel %vm69, %v45, 0
    %73 = vmatprep.subr.bf16.mxu0 0
    %74 = vmatpush1.bf16.msra.mxu0 %v65
    %75 = vmatprep.subr.bf16.mxu0 0
    %76 = vmatpush1.bf16.msra.mxu0 %v66
    %77 = vmatprep.subr.bf16.mxu0 0
    %78 = vmatpush1.bf16.msra.mxu0 0
    %79 = vmatprep.subr.bf16.mxu0 0
    %80 = vmatpush1.bf16.msra.mxu0 0
    %81 = vmatprep.subr.bf16.mxu0 0
    %82 = vmatpush1.bf16.msra.mxu0 0
    %83 = vmatprep.subr.bf16.mxu0 0
    %84 = vmatpush1.bf16.msra.mxu0 0
    %85 = vmatprep.subr.bf16.mxu0 0
    %86 = vmatpush1.bf16.msra.mxu0 0
    %87 = vmatprep.subr.bf16.mxu0 0
    %88 = vmatpush1.bf16.msra.mxu0 0
    %89 = vmatprep.subr.bf16.mxu0 0
    %90 = vmatpush1.bf16.msra.mxu0 0
    %91 = vmatprep.subr.bf16.mxu0 0
    %92 = vmatpush1.bf16.msra.mxu0 0
    %93 = vmatprep.subr.bf16.mxu0 0
    %94 = vmatpush1.bf16.msra.mxu0 0
    %95 = vmatprep.subr.bf16.mxu0 0
    %96 = vmatpush1.bf16.msra.mxu0 0
    %97 = vmatprep.subr.bf16.mxu0 0
    %98 = vmatpush1.bf16.msra.mxu0 0
    %99 = vmatprep.subr.bf16.mxu0 0
    %100 = vmatpush1.bf16.msra.mxu0 0
    %101 = vmatprep.subr.bf16.mxu0 0
    %102 = vmatpush1.bf16.msra.mxu0 0
    %103 = vmatprep.subr.bf16.mxu0 0
    %104 = vmatpush1.bf16.msra.mxu0 0
    %105 = vmatprep.mubr.bf16.mxu0 0
    %106 = vmatmul.mubr.bf16.gmra.mrb[0].mxu0 %v71
    %v107 = vpop.f32.mrb[0].mxu0
    %v108 = vadd.f32 %v55, %v107
    %v109 = vpop.f32.mrb[0].mxu0
    %v110 = vpop.f32.mrb[0].mxu0
    %v111 = vadd.f32 %v55, %v110
    %v112 = vpop.f32.mrb[0].mxu0
    %113 = vdwg.mxu0
    %v114 = vlaneseq
    %v115 = vand.u32 %v114, 127
    %vm116 = vcmp.ge.s32.totalorder %v115, 16
    %vm117 = vcmp.lt.s32.totalorder %v115, 32
    %vm118 = vmand %vm116, %vm117
    %v119 = vmul.f32 %v108, 1.442695
    %v120 = vpow.pop %v119
    %v121 = vmul.f32 %v111, 1.442695
    %v122 = vpow.pop %v121
    %v123 = vsel %vm118, %v120, %v108
    %v124 = vsel %vm118, %v122, %v111
    %vm125 = vcmask 277504
    %126 = vst.msk [vmem:[%s3] sm:$0xff] %vm125, %v123
    %127 = vst.msk [vmem:[%s3 + $0x8] sm:$0xff] %vm125, %v124
    // Predicated region
    $region22: #{vaernn_no_gmm_head.1} parent=1 // pred_check
      _
    $region23: #{vaernn_no_gmm_head.1} parent=1 // pred_check_branch
      %129 = sbr.rel (0) target = $region25
    $region24: #{vaernn_no_gmm_head.1} parent=1 // pred_region
      _
    $region25: #{vaernn_no_gmm_head.1} parent=1 // pred_fallthru
      _
    // Predicated region
    $region26: #{vaernn_no_gmm_head.1} parent=1 // pred_check
      _
    $region27: #{vaernn_no_gmm_head.1} parent=1 // pred_check_branch
      %131 = sbr.rel (0) target = $region29
    $region28: #{vaernn_no_gmm_head.1} parent=1 // pred_region
      _
    $region29: #{vaernn_no_gmm_head.1} parent=1 // pred_fallthru
      _
    %132 = vsyncpa [#allocation3], 1
    %133 = vsyncpa [#allocation5], 1

</llo_original>
